<compile_context>
chip_gen: v7x
topology: tpu7x:2x2x1
jax: 0.10.0
libtpu: 0.0.40
codegen_flags: <defaults>
</compile_context>

<pallas_src>
import jax
import jax.numpy as jnp
from jax.experimental import pallas as pl
from jax.experimental.pallas import tpu as pltpu


def _round_up(x, m):
    return ((x + m - 1) // m) * m


def _round_down(x, m):
    return (x // m) * m


def _default_vmem_limit_bytes():
    """Generation-aware scoped-VMEM request: ~3/4 of per-core physical VMEM.

    v7x (64 MiB physical) -> 48 MiB; v5e/v6e (128 MiB) -> 96 MiB. This is a
    trace-time hardware query only (never executes a kernel), so the guarded
    fallback is safe and conservative (v7x-sized).
    """
    try:
        phys = int(pltpu.get_tpu_info().vmem_capacity_bytes)
    except Exception:
        phys = 64 * 1024 * 1024
    return (phys * 3) // 4


# --------------------------------------------------------------------------- #
# Kernels
# --------------------------------------------------------------------------- #
def _geu_resident_kernel(x_ref, w1_ref, b1_ref, w2_ref, b2_ref, o_ref):
    # Both matmuls feed the MXU in the weight dtype (bf16 fast path when the
    # params are bf16; identity for f32); accumulation stays f32 on the MXU.
    y = jnp.dot(x_ref[...].astype(w1_ref.dtype), w1_ref[...],
                preferred_element_type=jnp.float32)
    y = y + b1_ref[...].astype(jnp.float32)
    z = jnp.dot(y.astype(w2_ref.dtype), w2_ref[...],
                preferred_element_type=jnp.float32)
    z = z + b2_ref[...].astype(jnp.float32)
    # GLU over concatenated halves == y * sigmoid(z); f32 epilogue.
    o_ref[...] = (y * jax.nn.sigmoid(z)).astype(o_ref.dtype)


def _geu_ktiled_kernel(x_ref, w1_ref, b1_ref, w2_ref, b2_ref, o_ref, y_acc):
    # Grid = (batch tiles, K tiles over Din); K axis is last ("arbitrary").
    k = pl.program_id(1)

    @pl.when(k == 0)
    def _init():
        y_acc[...] = jnp.zeros_like(y_acc)

    y_acc[...] += jnp.dot(x_ref[...].astype(w1_ref.dtype), w1_ref[...],
                          preferred_element_type=jnp.float32)

    @pl.when(k == pl.num_programs(1) - 1)
    def _epilogue():
        y = y_acc[...] + b1_ref[...].astype(jnp.float32)
        z = jnp.dot(y.astype(w2_ref.dtype), w2_ref[...],
                    preferred_element_type=jnp.float32)
        z = z + b2_ref[...].astype(jnp.float32)
        o_ref[...] = (y * jax.nn.sigmoid(z)).astype(o_ref.dtype)


# --------------------------------------------------------------------------- #
# Wrapper
# --------------------------------------------------------------------------- #
def _cost(B, Din, Dout, act_itemsize, w_itemsize):
    flops = 2 * B * Din * Dout + 2 * B * Dout * Dout + 4 * B * Dout
    bytes_accessed = ((B * Din + B * Dout) * act_itemsize
                      + (Din * Dout + Dout * Dout + 2 * Dout) * w_itemsize)
    return pl.CostEstimate(flops=flops, transcendentals=B * Dout,
                           bytes_accessed=bytes_accessed)


def gated_embedding_unit(x, w1, b1, w2, b2, *, block_b=512, block_k=512,
                         compute_dtype=None, vmem_limit_bytes=None,
                         force_ktiled=False):
    """x: [B, Din]; w1: [Din, Dout]; b1: [Dout]; w2: [Dout, Dout]; b2: [Dout].

    Weights are pre-transposed ([in, out]) relative to nn.Linear storage.
    compute_dtype: optionally cast the weights (and hence both MXU operands)
    to e.g. jnp.bfloat16 for the bf16 MXU fast path; accumulation stays f32
    and the output keeps x.dtype.
    """
    B, Din = x.shape
    Dout = w1.shape[1]
    out_dtype = x.dtype

    if compute_dtype is not None:
        w1 = w1.astype(compute_dtype)
        w2 = w2.astype(compute_dtype)
    b1 = b1.reshape(1, Dout)
    b2 = b2.reshape(1, Dout)

    act_itemsize = jnp.dtype(x.dtype).itemsize
    w_itemsize = jnp.dtype(w1.dtype).itemsize

    if vmem_limit_bytes is None:
        vmem_limit_bytes = _default_vmem_limit_bytes()
    # Leave headroom inside the scoped limit for Mosaic internal scratch.
    budget = (vmem_limit_bytes * 7) // 8

    cost = _cost(B, Din, Dout, act_itemsize, w_itemsize)

    def solve_bb(avail_bytes, per_row_bytes):
        """Largest legal batch tile that fits the VMEM budget (0 if none)."""
        fit = avail_bytes // per_row_bytes
        bb = _round_down(min(block_b, _round_up(B, 8), fit), 8)
        if bb >= B:
            return B          # single full-batch block: full dim is always legal
        return bb if bb >= 8 else 0

    # ---------------- resident-weights path ---------------- #
    # Weight/bias blocks use constant index maps, so they are DMAed only once;
    # the pipeline still allocates double buffers for them (hence 2x below).
    # TODO(synk): single-buffer them (pipeline_mode=pl.Buffered(1)) once
    # verified on the target jax build to reclaim ~half the weight VMEM.
    w_fixed = 2 * (Din * Dout + Dout * Dout + 2 * Dout) * w_itemsize
    per_row = 2 * (Din + Dout) * act_itemsize + 3 * Dout * 4  # x/out dbuf + f32 temps
    bb = 0 if force_ktiled else solve_bb(budget - w_fixed, per_row)

    if bb:
        grid = (pl.cdiv(B, bb),)
        call = pl.pallas_call(
            _geu_resident_kernel,
            out_shape=jax.ShapeDtypeStruct((B, Dout), out_dtype),
            grid_spec=pltpu.PrefetchScalarGridSpec(
                num_scalar_prefetch=0,
                grid=grid,
                in_specs=[
                    pl.BlockSpec((bb, Din), lambda i: (i, 0)),     # x (streamed)
                    pl.BlockSpec((Din, Dout), lambda i: (0, 0)),   # W1 (resident)
                    pl.BlockSpec((1, Dout), lambda i: (0, 0)),     # b1
                    pl.BlockSpec((Dout, Dout), lambda i: (0, 0)),  # W2 (resident)
                    pl.BlockSpec((1, Dout), lambda i: (0, 0)),     # b2
                ],
                out_specs=pl.BlockSpec((bb, Dout), lambda i: (i, 0)),
            ),
            compiler_params=pltpu.CompilerParams(
                # TODO(synk): on v7x try pltpu.CORE_PARALLEL / pl.core_map for
                # an explicit 2-TensorCore split of the batch axis.
                dimension_semantics=("parallel",),
                vmem_limit_bytes=vmem_limit_bytes,
            ),
            cost_estimate=cost,
        )
        return call(x, w1, b1, w2, b2)

    # ---------------- K-tiled fallback (W1 too large to keep resident) -------- #
    bk = min(block_k, _round_up(Din, 128))
    bk = max(_round_down(bk, 128), 128)
    while True:
        w_fixed = 2 * (bk * Dout + Dout * Dout + 2 * Dout) * w_itemsize
        per_row = 2 * (bk + Dout) * act_itemsize + 4 * Dout * 4  # + f32 y accumulator
        if solve_bb(budget - w_fixed, per_row) or bk == 128:
            break
        bk //= 2
    bb = solve_bb(budget - w_fixed, per_row)
    if not bb:
        # TODO(synk): also tile Dout (second matmul / W2) for extreme Dout; for
        # now fall back to the smallest legal batch tile.
        bb = B if B <= 8 else 8

    # The contraction axis must be padded so every (bb, bk) x-block is fully in
    # bounds (a masked partial K block would feed undefined data into the y
    # accumulator). Zero padding is semantically inert and is only hit on this
    # large-Din fallback path.
    Din_p = _round_up(Din, bk)
    x_p = x if Din_p == Din else jnp.pad(x, ((0, 0), (0, Din_p - Din)))
    w1_p = w1 if Din_p == Din else jnp.pad(w1, ((0, Din_p - Din), (0, 0)))

    grid = (pl.cdiv(B, bb), Din_p // bk)
    call = pl.pallas_call(
        _geu_ktiled_kernel,
        out_shape=jax.ShapeDtypeStruct((B, Dout), out_dtype),
        grid_spec=pltpu.PrefetchScalarGridSpec(
            num_scalar_prefetch=0,
            grid=grid,
            in_specs=[
                pl.BlockSpec((bb, bk), lambda i, k: (i, k)),      # x (streamed)
                pl.BlockSpec((bk, Dout), lambda i, k: (k, 0)),    # W1 slab
                pl.BlockSpec((1, Dout), lambda i, k: (0, 0)),     # b1
                pl.BlockSpec((Dout, Dout), lambda i, k: (0, 0)),  # W2 (resident)
                pl.BlockSpec((1, Dout), lambda i, k: (0, 0)),     # b2
            ],
            out_specs=pl.BlockSpec((bb, Dout), lambda i, k: (i, 0)),
            scratch_shapes=[pltpu.VMEM((bb, Dout), jnp.float32)],
        ),
        compiler_params=pltpu.CompilerParams(
            dimension_semantics=("parallel", "arbitrary"),
            vmem_limit_bytes=vmem_limit_bytes,
        ),
        cost_estimate=cost,
    )
    return call(x_p, w1_p, b1, w2, b2)


# --------------------------------------------------------------------------- #
# Reference + test
# --------------------------------------------------------------------------- #
def _reference(x, w1, b1, w2, b2):
    y = x @ w1 + b1
    z = y @ w2 + b2
    return y * jax.nn.sigmoid(z)


if __name__ == "__main__":
    key = jax.random.PRNGKey(0)

    def make_case(case_key, B, Din, Dout):
        k_x, k_w1, k_b1, k_w2, k_b2 = jax.random.split(case_key, 5)
        x = jax.random.normal(k_x, (B, Din), dtype=jnp.float32)
        w1 = jax.random.normal(k_w1, (Din, Dout), dtype=jnp.float32) * (Din ** -0.5)
        b1 = jax.random.normal(k_b1, (Dout,), dtype=jnp.float32) * 0.01
        w2 = jax.random.normal(k_w2, (Dout, Dout), dtype=jnp.float32) * (Dout ** -0.5)
        b2 = jax.random.normal(k_b2, (Dout,), dtype=jnp.float32) * 0.01
        return x, w1, b1, w2, b2

    k1, k2, k3 = jax.random.split(key, 3)

    # Case 1: resident-weights path, batch a multiple of 8.
    args = make_case(k1, 16, 32, 64)
    out = jax.block_until_ready(gated_embedding_unit(*args))
    ref = _reference(*args)
    assert out.shape == ref.shape
    assert jnp.allclose(out, ref, atol=1e-5, rtol=1e-5), "case1 mismatch"

    # Case 2: resident path with ragged batch and non-128 feature dims
    # (no wrapper pad or output slice needed).
    args = make_case(k2, 13, 40, 56)
    out = jax.block_until_ready(gated_embedding_unit(*args))
    ref = _reference(*args)
    assert out.shape == ref.shape
    assert jnp.allclose(out, ref, atol=1e-5, rtol=1e-5), "case2 mismatch"

    # Case 3: exercise the K-tiled (large-Din) fallback path.
    args = make_case(k3, 16, 256, 64)
    out = jax.block_until_ready(
        gated_embedding_unit(*args, block_k=128, force_ktiled=True))
    ref = _reference(*args)
    assert out.shape == ref.shape
    assert jnp.allclose(out, ref, atol=1e-5, rtol=1e-5), "case3 mismatch"

    print("KERNEL_OK")
</pallas_src>

<mosaic_0001>
module attributes {stable_mosaic.version = 11 : i64} {
  func.func @_geu_resident_kernel(%arg0: i32, %arg1: memref<16x32xf32, #tpu.memory_space<vmem>>, %arg2: memref<32x64xf32, #tpu.memory_space<vmem>>, %arg3: memref<1x64xf32, #tpu.memory_space<vmem>>, %arg4: memref<64x64xf32, #tpu.memory_space<vmem>>, %arg5: memref<1x64xf32, #tpu.memory_space<vmem>>, %arg6: memref<16x64xf32, #tpu.memory_space<vmem>>) attributes {dimension_semantics = [#tpu.dimension_semantics<parallel>], iteration_bounds = array<i64: 1>, scalar_prefetch = 0 : i64, scratch_operands = 0 : i64, tpu.core_type = #tpu.core_type<tc>, window_params = [{transform_indices = @transform_0, window_bounds = array<i64: 16, 32>}, {pipeline_mode = #tpu.pipeline_mode<synchronous>, transform_indices = @transform_1, window_bounds = array<i64: 32, 64>}, {pipeline_mode = #tpu.pipeline_mode<synchronous>, transform_indices = @transform_2, window_bounds = array<i64: 1, 64>}, {pipeline_mode = #tpu.pipeline_mode<synchronous>, transform_indices = @transform_3, window_bounds = array<i64: 64, 64>}, {pipeline_mode = #tpu.pipeline_mode<synchronous>, transform_indices = @transform_4, window_bounds = array<i64: 1, 64>}, {transform_indices = @transform_5, window_bounds = array<i64: 16, 64>}]} {
    %c0 = arith.constant 0 : index
    %c0_0 = arith.constant 0 : index
    %0 = vector.load %arg1[%c0, %c0_0] : memref<16x32xf32, #tpu.memory_space<vmem>>, vector<16x32xf32>
    %c0_1 = arith.constant 0 : index
    %c0_2 = arith.constant 0 : index
    %1 = vector.load %arg2[%c0_1, %c0_2] : memref<32x64xf32, #tpu.memory_space<vmem>>, vector<32x64xf32>
    %cst = arith.constant dense<0.000000e+00> : vector<16x64xf32>
    %2 = tpu.matmul %0, %1, %cst {dimension_numbers = #tpu.dot_dimension_numbers<[1], [0], [0], [1], [0, 0, 1, 1], [], []>} : vector<16x32xf32>, vector<32x64xf32>, vector<16x64xf32> -> vector<16x64xf32>
    %c0_3 = arith.constant 0 : index
    %c0_4 = arith.constant 0 : index
    %3 = vector.load %arg3[%c0_3, %c0_4] : memref<1x64xf32, #tpu.memory_space<vmem>>, vector<1x64xf32>
    %4 = vector.broadcast %3 : vector<1x64xf32> to vector<16x64xf32>
    %5 = arith.addf %2, %4 : vector<16x64xf32>
    %c0_5 = arith.constant 0 : index
    %c0_6 = arith.constant 0 : index
    %6 = vector.load %arg4[%c0_5, %c0_6] : memref<64x64xf32, #tpu.memory_space<vmem>>, vector<64x64xf32>
    %cst_7 = arith.constant dense<0.000000e+00> : vector<16x64xf32>
    %7 = tpu.matmul %5, %6, %cst_7 {dimension_numbers = #tpu.dot_dimension_numbers<[1], [0], [0], [1], [0, 0, 1, 1], [], []>} : vector<16x64xf32>, vector<64x64xf32>, vector<16x64xf32> -> vector<16x64xf32>
    %c0_8 = arith.constant 0 : index
    %c0_9 = arith.constant 0 : index
    %8 = vector.load %arg5[%c0_8, %c0_9] : memref<1x64xf32, #tpu.memory_space<vmem>>, vector<1x64xf32>
    %9 = vector.broadcast %8 : vector<1x64xf32> to vector<16x64xf32>
    %10 = arith.addf %7, %9 : vector<16x64xf32>
    %11 = arith.negf %10 : vector<16x64xf32>
    %12 = math.exp %11 : vector<16x64xf32>
    %cst_10 = arith.constant 1.000000e+00 : f32
    %13 = vector.broadcast %cst_10 : f32 to vector<16x64xf32>
    %14 = arith.addf %13, %12 : vector<16x64xf32>
    %15 = arith.divf %13, %14 : vector<16x64xf32>
    %16 = arith.mulf %5, %15 : vector<16x64xf32>
    %c0_11 = arith.constant 0 : index
    %c0_12 = arith.constant 0 : index
    %17 = vector.load %arg6[%c0_11, %c0_12] : memref<16x64xf32, #tpu.memory_space<vmem>>, vector<16x64xf32>
    tpu.vector_store %arg6[%c0_11, %c0_12], %16 {strides = array<i32>} : memref<16x64xf32, #tpu.memory_space<vmem>>, vector<16x64xf32>,
    return
  }
  func.func @transform_0(%arg0: i32) -> (i32, i32) {
    %c0_i32 = arith.constant 0 : i32
    %c0_i32_0 = arith.constant 0 : i32
    return %arg0, %c0_i32 : i32, i32
  }
  func.func @transform_1(%arg0: i32) -> (i32, i32) {
    %c0_i32 = arith.constant 0 : i32
    %c0_i32_0 = arith.constant 0 : i32
    %c0_i32_1 = arith.constant 0 : i32
    return %c0_i32, %c0_i32_0 : i32, i32
  }
  func.func @transform_2(%arg0: i32) -> (i32, i32) {
    %c0_i32 = arith.constant 0 : i32
    %c0_i32_0 = arith.constant 0 : i32
    %c0_i32_1 = arith.constant 0 : i32
    return %c0_i32, %c0_i32_0 : i32, i32
  }
  func.func @transform_3(%arg0: i32) -> (i32, i32) {
    %c0_i32 = arith.constant 0 : i32
    %c0_i32_0 = arith.constant 0 : i32
    %c0_i32_1 = arith.constant 0 : i32
    return %c0_i32, %c0_i32_0 : i32, i32
  }
  func.func @transform_4(%arg0: i32) -> (i32, i32) {
    %c0_i32 = arith.constant 0 : i32
    %c0_i32_0 = arith.constant 0 : i32
    %c0_i32_1 = arith.constant 0 : i32
    return %c0_i32, %c0_i32_0 : i32, i32
  }
  func.func @transform_5(%arg0: i32) -> (i32, i32) {
    %c0_i32 = arith.constant 0 : i32
    %c0_i32_0 = arith.constant 0 : i32
    return %arg0, %c0_i32 : i32, i32
  }
}

</mosaic_0001>

<llo_original>
// kernel: tpu_custom_call.1
$region0: #{tpu_custom_call.1}
  #allocation0 [shape = 'u32[]', space=smem, size = 0x4, offset = 0x4, fixed_abs, tag = 'smem constant byte address 0x4 - core index']
  #allocation1 [shape = 'u32[144,128]{1,0:T(1,128)}', space=vmem, size = 0x12000, scoped, tag = 'internal scratch']
  %s0 = inlined_call_operand.hbm [shape: f32[16,32], index: 0, kind: input, shape index: {}]
  %s1 = inlined_call_operand.hbm [shape: f32[32,64], index: 1, kind: input, shape index: {}]
  %s2 = inlined_call_operand.vmem [shape: f32[1,64], index: 2, kind: input, shape index: {}]
  %s3 = inlined_call_operand.hbm [shape: f32[64,64], index: 3, kind: input, shape index: {}]
  %s4 = inlined_call_operand.vmem [shape: f32[1,64], index: 4, kind: input, shape index: {}]
  %s5 = inlined_call_operand.hbm [shape: f32[16,64], index: 5, kind: output, shape index: {}]
  %s6 = sld [smem:[#allocation0]]
  $region42: #{tpu_custom_call.1} parent=0
    _
  %s8 = ssub.s32 1, %s6
  %s9 = scalar_select 0, %s8, %s6
  $region1: #{tpu_custom_call.1} parent=0
    #allocation2 [shape = 'u8[8192]{0}', space=vmem, size = 0x2000, scoped, tag = 'input window, operand 0, single buffered']
    #allocation3 [shape = 's32[1]{0}', space=sflag, size = 0x4, scoped, tag = 'scoped memory for tpu_custom_call.1']
    #allocation4 [shape = 's32[1]{0}', space=sflag, size = 0x4, scoped, tag = 'scoped memory for tpu_custom_call.1']
    #allocation5 [shape = 'u8[16384]{0}', space=vmem, size = 0x4000, scoped, tag = 'input window, operand 1, single buffered']
    #allocation6 [shape = 's32[1]{0}', space=sflag, size = 0x4, scoped, tag = 'scoped memory for tpu_custom_call.1']
    #allocation7 [shape = 'u8[32768]{0}', space=vmem, size = 0x8000, scoped, tag = 'input window, operand 3, single buffered']
    #allocation8 [shape = 'u8[8192]{0}', space=vmem, size = 0x2000, scoped, tag = 'output window, operand 0, single buffered']
    %10 = vsyncpa [#allocation3], 0
    %11 = vsyncpa [#allocation6], 0
    %12 = vsyncpa [#allocation4], 0
    // Predicated region
    $region2: #{tpu_custom_call.1} parent=1 // pred_check
      _
    $region3: #{tpu_custom_call.1} parent=1 // pred_check_branch
      %14 = sbr.rel (0) target = $region5
    $region4: #{tpu_custom_call.1} parent=1 // pred_region
      %s16 = ssub.s32 256, 256
      %17 = vsyncadd [#allocation3], %s16
      %s18 = sshll.u32 [#allocation2], 4
      %s19 = int_to_ptr.vmem [resolvable:$true] %s18
      %24 = dma.hbm_to_vmem [thread:$0]  %s0, 256, %s19, [#allocation3], 128, 128, 8
    $region5: #{tpu_custom_call.1} parent=1 // pred_fallthru
      _
    // Predicated region
    $region6: #{tpu_custom_call.1} parent=1 // pred_check
      _
    $region7: #{tpu_custom_call.1} parent=1 // pred_check_branch
      %26 = sbr.rel (0) target = $region9
    $region8: #{tpu_custom_call.1} parent=1 // pred_region
      %s28 = ssub.s32 512, 512
      %29 = vsyncadd [#allocation6], %s28
      %s30 = sshll.u32 [#allocation5], 4
      %s31 = int_to_ptr.vmem [resolvable:$true] %s30
      %36 = dma.hbm_to_vmem [thread:$0]  %s1, 512, %s31, [#allocation6], 128, 128, 8
    $region9: #{tpu_custom_call.1} parent=1 // pred_fallthru
      _
    // Predicated region
    $region10: #{tpu_custom_call.1} parent=1 // pred_check
      _
    $region11: #{tpu_custom_call.1} parent=1 // pred_check_branch
      %38 = sbr.rel (0) target = $region13
    $region12: #{tpu_custom_call.1} parent=1 // pred_region
      _
    $region13: #{tpu_custom_call.1} parent=1 // pred_fallthru
      _
    // Predicated region
    $region14: #{tpu_custom_call.1} parent=1 // pred_check
      _
    $region15: #{tpu_custom_call.1} parent=1 // pred_check_branch
      %40 = sbr.rel (0) target = $region17
    $region16: #{tpu_custom_call.1} parent=1 // pred_region
      %s42 = ssub.s32 1024, 1024
      %43 = vsyncadd [#allocation6], %s42
      %s44 = sshll.u32 [#allocation7], 4
      %s45 = int_to_ptr.vmem [resolvable:$true] %s44
      %50 = dma.hbm_to_vmem [thread:$0]  %s3, 1024, %s45, [#allocation6], 128, 128, 8
    $region17: #{tpu_custom_call.1} parent=1 // pred_fallthru
      _
    // Predicated region
    $region18: #{tpu_custom_call.1} parent=1 // pred_check
      _
    $region19: #{tpu_custom_call.1} parent=1 // pred_check_branch
      %52 = sbr.rel (0) target = $region21
    $region20: #{tpu_custom_call.1} parent=1 // pred_region
      _
    $region21: #{tpu_custom_call.1} parent=1 // pred_fallthru
      _
    // Predicated region
    $region22: #{tpu_custom_call.1} parent=1 // pred_check
      _
    $region23: #{tpu_custom_call.1} parent=1 // pred_check_branch
      %54 = sbr.rel (0) target = $region25
    $region24: #{tpu_custom_call.1} parent=1 // pred_region
      %55 = dma.done [#allocation3], 256
    $region25: #{tpu_custom_call.1} parent=1 // pred_fallthru
      _
    // Predicated region
    $region26: #{tpu_custom_call.1} parent=1 // pred_check
      _
    $region27: #{tpu_custom_call.1} parent=1 // pred_check_branch
      %57 = sbr.rel (0) target = $region29
    $region28: #{tpu_custom_call.1} parent=1 // pred_region
      %58 = dma.done [#allocation6], 512
    $region29: #{tpu_custom_call.1} parent=1 // pred_fallthru
      _
    // Predicated region
    $region30: #{tpu_custom_call.1} parent=1 // pred_check
      _
    $region31: #{tpu_custom_call.1} parent=1 // pred_check_branch
      %60 = sbr.rel (0) target = $region33
    $region32: #{tpu_custom_call.1} parent=1 // pred_region
      %61 = dma.done [#allocation6], 1024
    $region33: #{tpu_custom_call.1} parent=1 // pred_fallthru
      _
    %v62 = vld [vmem:[#allocation2] sm:$0xff]
    %v63 = vld [vmem:[#allocation2 + $0x8] sm:$0xff]
    %v64 = vld [vmem:[#allocation5] sm:$0xff]
    %v65 = vld [vmem:[#allocation5 + $0x8] sm:$0xff]
    %v66 = vld [vmem:[#allocation5 + $0x10] sm:$0xff]
    %v67 = vld [vmem:[#allocation5 + $0x18] sm:$0xff]
    %v68 = vld [vmem:[%s2] sm:$0x1]
    %v70 = vlaneseq
    %v71 = vshrl.u32 %v70, 7
    %v72 = vsub.s32 0, %v71
    %v73 = vrot.slane %v68, %v72
    %vm75 = vcmask 261120
    %v77 = vsel %vm75, %v62, 0
    %v80 = vsel %vm75, %v63, 0
    %82 = vmatprep.subr.mxu0 0.0
    %83 = vmatpush1.msra.mxu0 %v64
    %84 = vmatprep.subr.mxu0 0.0
    %85 = vmatpush1.msra.mxu0 %v65
    %86 = vmatprep.subr.mxu0 0.0
    %87 = vmatpush1.msra.mxu0 %v66
    %88 = vmatprep.subr.mxu0 0.0
    %89 = vmatpush1.msra.mxu0 %v67
    %90 = vmatprep.subr.mxu0 0.0
    %91 = vmatpush1.msra.mxu0 0.0
    %92 = vmatprep.subr.mxu0 0.0
    %93 = vmatpush1.msra.mxu0 0.0
    %94 = vmatprep.subr.mxu0 0.0
    %95 = vmatpush1.msra.mxu0 0.0
    %96 = vmatprep.subr.mxu0 0.0
    %97 = vmatpush1.msra.mxu0 0.0
    %98 = vmatprep.subr.mxu0 0.0
    %99 = vmatpush1.msra.mxu0 0.0
    %100 = vmatprep.subr.mxu0 0.0
    %101 = vmatpush1.msra.mxu0 0.0
    %102 = vmatprep.subr.mxu0 0.0
    %103 = vmatpush1.msra.mxu0 0.0
    %104 = vmatprep.subr.mxu0 0.0
    %105 = vmatpush1.msra.mxu0 0.0
    %106 = vmatprep.subr.mxu0 0.0
    %107 = vmatpush1.msra.mxu0 0.0
    %108 = vmatprep.subr.mxu0 0.0
    %109 = vmatpush1.msra.mxu0 0.0
    %110 = vmatprep.subr.mxu0 0.0
    %111 = vmatpush1.msra.mxu0 0.0
    %112 = vmatprep.subr.mxu0 0.0
    %113 = vmatpush1.msra.mxu0 0.0
    %114 = vmatprep.subr.mxu0 0.0
    %115 = vmatpush1.msra.mxu0 0.0
    %116 = vmatprep.subr.mxu0 0.0
    %117 = vmatpush1.msra.mxu0 0.0
    %118 = vmatprep.subr.mxu0 0.0
    %119 = vmatpush1.msra.mxu0 0.0
    %120 = vmatprep.subr.mxu0 0.0
    %121 = vmatpush1.msra.mxu0 0.0
    %122 = vmatprep.subr.mxu0 0.0
    %123 = vmatpush1.msra.mxu0 0.0
    %124 = vmatprep.subr.mxu0 0.0
    %125 = vmatpush1.msra.mxu0 0.0
    %126 = vmatprep.subr.mxu0 0.0
    %127 = vmatpush1.msra.mxu0 0.0
    %128 = vmatprep.subr.mxu0 0.0
    %129 = vmatpush1.msra.mxu0 0.0
    %130 = vmatprep.subr.mxu0 0.0
    %131 = vmatpush1.msra.mxu0 0.0
    %132 = vmatprep.subr.mxu0 0.0
    %133 = vmatpush1.msra.mxu0 0.0
    %134 = vmatprep.subr.mxu0 0.0
    %135 = vmatpush1.msra.mxu0 0.0
    %136 = vmatprep.subr.mxu0 0.0
    %137 = vmatpush1.msra.mxu0 0.0
    %138 = vmatprep.subr.mxu0 0.0
    %139 = vmatpush1.msra.mxu0 0.0
    %140 = vmatprep.subr.mxu0 0.0
    %141 = vmatpush1.msra.mxu0 0.0
    %142 = vmatprep.subr.mxu0 0.0
    %143 = vmatpush1.msra.mxu0 0.0
    %144 = vmatprep.subr.mxu0 0.0
    %145 = vmatpush1.msra.mxu0 0.0
    %146 = vmatprep.mubr.f32.mxu0 0.0
    %147 = vmatmul.mubr.f32.gmra.mrb[0].mxu0 %v77
    %v148 = vpop.f32.mrb[0].mxu0
    %v149 = vadd.f32 %v73, %v148
    %v150 = vpop.f32.mrb[0].mxu0
    %151 = vmatprep.mubr.f32.mxu0 0.0
    %152 = vmatmul.mubr.f32.gmra.mrb[0].mxu0 %v80
    %v153 = vpop.f32.mrb[0].mxu0
    %v154 = vadd.f32 %v73, %v153
    %v155 = vpop.f32.mrb[0].mxu0
    %156 = vdwg.mxu0
    %v157 = vld [vmem:[#allocation7] sm:$0xff]
    %v158 = vld [vmem:[#allocation7 + $0x8] sm:$0xff]
    %v159 = vld [vmem:[#allocation7 + $0x10] sm:$0xff]
    %v160 = vld [vmem:[#allocation7 + $0x18] sm:$0xff]
    %v161 = vld [vmem:[#allocation7 + $0x20] sm:$0xff]
    %v162 = vld [vmem:[#allocation7 + $0x28] sm:$0xff]
    %v163 = vld [vmem:[#allocation7 + $0x30] sm:$0xff]
    %v164 = vld [vmem:[#allocation7 + $0x38] sm:$0xff]
    %v165 = vld [vmem:[%s4] sm:$0x1]
    %v167 = vlaneseq
    %v168 = vshrl.u32 %v167, 7
    %v169 = vsub.s32 0, %v168
    %v170 = vrot.slane %v165, %v169
    %vm172 = vcmask 523264
    %v174 = vsel %vm172, %v149, 0
    %v177 = vsel %vm172, %v154, 0
    %179 = vmatprep.subr.mxu0 0.0
    %180 = vmatpush1.msra.mxu0 %v157
    %181 = vmatprep.subr.mxu0 0.0
    %182 = vmatpush1.msra.mxu0 %v158
    %183 = vmatprep.subr.mxu0 0.0
    %184 = vmatpush1.msra.mxu0 %v159
    %185 = vmatprep.subr.mxu0 0.0
    %186 = vmatpush1.msra.mxu0 %v160
    %187 = vmatprep.subr.mxu0 0.0
    %188 = vmatpush1.msra.mxu0 %v161
    %189 = vmatprep.subr.mxu0 0.0
    %190 = vmatpush1.msra.mxu0 %v162
    %191 = vmatprep.subr.mxu0 0.0
    %192 = vmatpush1.msra.mxu0 %v163
    %193 = vmatprep.subr.mxu0 0.0
    %194 = vmatpush1.msra.mxu0 %v164
    %195 = vmatprep.subr.mxu0 0.0
    %196 = vmatpush1.msra.mxu0 0.0
    %197 = vmatprep.subr.mxu0 0.0
    %198 = vmatpush1.msra.mxu0 0.0
    %199 = vmatprep.subr.mxu0 0.0
    %200 = vmatpush1.msra.mxu0 0.0
    %201 = vmatprep.subr.mxu0 0.0
    %202 = vmatpush1.msra.mxu0 0.0
    %203 = vmatprep.subr.mxu0 0.0
    %204 = vmatpush1.msra.mxu0 0.0
    %205 = vmatprep.subr.mxu0 0.0
    %206 = vmatpush1.msra.mxu0 0.0
    %207 = vmatprep.subr.mxu0 0.0
    %208 = vmatpush1.msra.mxu0 0.0
    %209 = vmatprep.subr.mxu0 0.0
    %210 = vmatpush1.msra.mxu0 0.0
    %211 = vmatprep.subr.mxu0 0.0
    %212 = vmatpush1.msra.mxu0 0.0
    %213 = vmatprep.subr.mxu0 0.0
    %214 = vmatpush1.msra.mxu0 0.0
    %215 = vmatprep.subr.mxu0 0.0
    %216 = vmatpush1.msra.mxu0 0.0
    %217 = vmatprep.subr.mxu0 0.0
    %218 = vmatpush1.msra.mxu0 0.0
    %219 = vmatprep.subr.mxu0 0.0
    %220 = vmatpush1.msra.mxu0 0.0
    %221 = vmatprep.subr.mxu0 0.0
    %222 = vmatpush1.msra.mxu0 0.0
    %223 = vmatprep.subr.mxu0 0.0
    %224 = vmatpush1.msra.mxu0 0.0
    %225 = vmatprep.subr.mxu0 0.0
    %226 = vmatpush1.msra.mxu0 0.0
    %227 = vmatprep.subr.mxu0 0.0
    %228 = vmatpush1.msra.mxu0 0.0
    %229 = vmatprep.subr.mxu0 0.0
    %230 = vmatpush1.msra.mxu0 0.0
    %231 = vmatprep.subr.mxu0 0.0
    %232 = vmatpush1.msra.mxu0 0.0
    %233 = vmatprep.subr.mxu0 0.0
    %234 = vmatpush1.msra.mxu0 0.0
    %235 = vmatprep.subr.mxu0 0.0
    %236 = vmatpush1.msra.mxu0 0.0
    %237 = vmatprep.subr.mxu0 0.0
    %238 = vmatpush1.msra.mxu0 0.0
    %239 = vmatprep.subr.mxu0 0.0
    %240 = vmatpush1.msra.mxu0 0.0
    %241 = vmatprep.subr.mxu0 0.0
    %242 = vmatpush1.msra.mxu0 0.0
    %243 = vmatprep.mubr.f32.mxu0 0.0
    %244 = vmatmul.mubr.f32.gmra.mrb[0].mxu0 %v174
    %v245 = vpop.f32.mrb[0].mxu0
    %v246 = vadd.f32 %v170, %v245
    %v247 = vpop.f32.mrb[0].mxu0
    %248 = vmatprep.mubr.f32.mxu0 0.0
    %249 = vmatmul.mubr.f32.gmra.mrb[0].mxu0 %v177
    %v250 = vpop.f32.mrb[0].mxu0
    %v251 = vadd.f32 %v170, %v250
    %v252 = vpop.f32.mrb[0].mxu0
    %253 = vdwg.mxu0
    %v254 = vxor.u32 %v246, 2147483648
    %v255 = vxor.u32 %v251, 2147483648
    %v256 = vmul.f32 %v254, 1.442695
    %v257 = vpow.pop %v256
    %v258 = vmul.f32 %v255, 1.442695
    %v259 = vpow.pop %v258
    %v260 = vadd.f32 %v257, 1.0
    %v261 = vadd.f32 %v259, 1.0
    %v262 = vrcp.pop %v260
    %v263 = vmul.f32 1.0, %v262
    %v264 = vrcp.pop %v261
    %v265 = vmul.f32 1.0, %v264
    %v266 = vmul.f32 %v149, %v263
    %v267 = vmul.f32 %v154, %v265
    %268 = vst.msk [vmem:[#allocation8] sm:$0xff] %vm172, %v266
    %269 = vst.msk [vmem:[#allocation8 + $0x8] sm:$0xff] %vm172, %v267
    // Predicated region
    $region34: #{tpu_custom_call.1} parent=1 // pred_check
      _
    $region35: #{tpu_custom_call.1} parent=1 // pred_check_branch
      %271 = sbr.rel (0) target = $region37
    $region36: #{tpu_custom_call.1} parent=1 // pred_region
      %s273 = ssub.s32 256, 256
      %274 = vsyncadd [#allocation4], %s273
      %s275 = sshll.u32 [#allocation8], 4
      %s276 = int_to_ptr.vmem [resolvable:$true] %s275
      %281 = dma.vmem_to_hbm [thread:$0]  %s276, 256, %s5, [#allocation4], 128, 128, 8
    $region37: #{tpu_custom_call.1} parent=1 // pred_fallthru
      _
    // Predicated region
    $region38: #{tpu_custom_call.1} parent=1 // pred_check
      _
    $region39: #{tpu_custom_call.1} parent=1 // pred_check_branch
      %283 = sbr.rel (0) target = $region41
    $region40: #{tpu_custom_call.1} parent=1 // pred_region
      %284 = dma.done [#allocation4], 256
    $region41: #{tpu_custom_call.1} parent=1 // pred_fallthru
      _
    %285 = vsyncpa [#allocation3], 1
    %286 = vsyncpa [#allocation6], 1
    %287 = vsyncpa [#allocation4], 1

</llo_original>
